<compile_context>
chip_gen: v6e
topology: v6e:2x2x1
jax: 0.10.0
libtpu: 0.0.40
codegen_flags: <defaults>
</compile_context>

<pallas_src>
import math
import functools

import jax
import jax.numpy as jnp
from jax import lax
from jax.experimental import pallas as pl
from jax.experimental.pallas import tpu as pltpu


# ---------------------------------------------------------------------------
# helpers
# ---------------------------------------------------------------------------
def _round_up(x, m):
    return (x + m - 1) // m * m


def _pad2(a, rows, cols):
    r, c = a.shape
    if r == rows and c == cols:
        return a
    return jnp.pad(a, ((0, rows - r), (0, cols - c)))


def _pick_tile(n_padded, max_tile):
    """Largest 128-multiple tile <= max_tile that divides n_padded (a 128-multiple)."""
    if n_padded <= max_tile:
        return n_padded
    best = 128
    t = 256
    while t <= max_tile:
        if n_padded % t == 0:
            best = t
        t += 128
    return best


# ---------------------------------------------------------------------------
# encode kernel: h = x @ w + b   (per row-tile), bf16 operands, f32 accumulation
# ---------------------------------------------------------------------------
def _encode_kernel(x_ref, w_ref, b_ref, h_ref):
    h = (
        jnp.dot(x_ref[...], w_ref[...], preferred_element_type=jnp.float32)
        + b_ref[...]
    )
    h_ref[...] = h.astype(h_ref.dtype)


def _encode(x, w, b, *, tile):
    n, f = x.shape
    d = w.shape[1]
    assert n % tile == 0
    return pl.pallas_call(
        _encode_kernel,
        out_shape=jax.ShapeDtypeStruct((n, d), jnp.bfloat16),
        grid=(n // tile,),
        in_specs=[
            pl.BlockSpec((tile, f), lambda i: (i, 0)),
            pl.BlockSpec((f, d), lambda i: (0, 0)),
            pl.BlockSpec((1, d), lambda i: (0, 0)),
        ],
        out_specs=pl.BlockSpec((tile, d), lambda i: (i, 0)),
        compiler_params=pltpu.CompilerParams(
            dimension_semantics=("parallel",)
        ),
    )(x, w, b)


# ---------------------------------------------------------------------------
# decode kernels: out[i, j] tile = sum_k h0[i, k] @ h1[j, k]^T
# ---------------------------------------------------------------------------
def _decode_kernel_single(h0_ref, h1_ref, o_ref):
    # D fits in one K-tile: write the output tile directly (no accumulator copy).
    o_ref[...] = lax.dot_general(
        h0_ref[...],
        h1_ref[...],
        dimension_numbers=(((1,), (1,)), ((), ())),
        preferred_element_type=jnp.float32,
    )


def _decode_kernel_acc(h0_ref, h1_ref, o_ref, acc_ref):
    @pl.when(pl.program_id(2) == 0)
    def _():
        acc_ref[...] = jnp.zeros_like(acc_ref)

    acc_ref[...] += lax.dot_general(
        h0_ref[...],
        h1_ref[...],
        dimension_numbers=(((1,), (1,)), ((), ())),
        preferred_element_type=jnp.float32,
    )

    @pl.when(pl.program_id(2) == pl.num_programs(2) - 1)
    def _():
        o_ref[...] = acc_ref[...]


def _decode(h0, h1, n1, n2, *, tm, tn, tk):
    n1p, dp = h0.shape
    n2p, dp2 = h1.shape
    assert dp == dp2 and n1p % tm == 0 and n2p % tn == 0 and dp % tk == 0
    ni, nj, nk = n1p // tm, n2p // tn, dp // tk

    # v7x megacore: put the output axis with more blocks first so both TCs get work.
    swap = nj > ni
    if swap:
        grid = (nj, ni, nk)
        h0_map = lambda j, i, k: (i, k)
        h1_map = lambda j, i, k: (j, k)
        o_map = lambda j, i, k: (i, j)
    else:
        grid = (ni, nj, nk)
        h0_map = lambda i, j, k: (i, k)
        h1_map = lambda i, j, k: (j, k)
        o_map = lambda i, j, k: (i, j)

    if nk == 1:
        kernel = _decode_kernel_single
        scratch = []
    else:
        kernel = _decode_kernel_acc
        scratch = [pltpu.VMEM((tm, tn), jnp.float32)]

    # h0 streamed once; h1 re-streamed once per row-block of output; f32 writeback.
    cost = pl.CostEstimate(
        flops=2 * n1p * n2p * dp,
        transcendentals=0,
        bytes_accessed=n1p * dp * 2 + max(ni, 1) * n2p * dp * 2 + n1 * n2 * 4,
    )

    return pl.pallas_call(
        kernel,
        out_shape=jax.ShapeDtypeStruct((n1, n2), jnp.float32),
        grid=grid,
        in_specs=[
            pl.BlockSpec((tm, tk), h0_map),
            pl.BlockSpec((tn, tk), h1_map),
        ],
        out_specs=pl.BlockSpec((tm, tn), o_map),
        scratch_shapes=scratch,
        compiler_params=pltpu.CompilerParams(
            dimension_semantics=("parallel", "parallel", "arbitrary")
        ),
        cost_estimate=cost,
    )(h0, h1)


# ---------------------------------------------------------------------------
# public wrapper
# ---------------------------------------------------------------------------
@functools.partial(
    jax.jit, static_argnames=("tm_max", "tn_max", "tk_max", "te_max")
)
def inner_product_decoder(
    x0, x1, w1, b1, w2, b2, *, tm_max=512, tn_max=1024, tk_max=512, te_max=512
):
    """x0: [N1, in1], x1: [N2, in2], w1: [in1, D], b1: [1, D], w2: [in2, D], b2: [1, D].

    Returns FC1(x0) @ FC2(x1)^T as [N1, N2] float32.
    """
    n1, in1 = x0.shape
    n2, in2 = x1.shape
    d = w1.shape[1]

    # pad feature / D dims and rows to 128 multiples (zeros keep contractions exact)
    dp = _round_up(d, 128)
    in1p = _round_up(in1, 128)
    in2p = _round_up(in2, 128)
    n1p = _round_up(n1, 128)
    n2p = _round_up(n2, 128)

    # bf16 operands for the MXU; accumulation stays f32 inside the kernels
    bf = jnp.bfloat16
    x0p = _pad2(x0, n1p, in1p).astype(bf)
    x1p = _pad2(x1, n2p, in2p).astype(bf)
    w1p = _pad2(w1, in1p, dp).astype(bf)
    w2p = _pad2(w2, in2p, dp).astype(bf)
    b1p = _pad2(b1, 1, dp)
    b2p = _pad2(b2, 1, dp)

    # FC1 / FC2 computed exactly once each (not per output tile)
    h0 = _encode(x0p, w1p, b1p, tile=_pick_tile(n1p, te_max))  # [n1p, dp] bf16
    h1 = _encode(x1p, w2p, b2p, tile=_pick_tile(n2p, te_max))  # [n2p, dp] bf16

    tm = _pick_tile(n1p, tm_max)
    tn = _pick_tile(n2p, tn_max)
    tk = _pick_tile(dp, tk_max)
    # decode writes the unpadded (n1, n2) output directly (ragged edges masked)
    return _decode(h0, h1, n1, n2, tm=tm, tn=tn, tk=tk)


# ---------------------------------------------------------------------------
# deterministic init mimicking torch.nn.Linear (uniform +/- 1/sqrt(in))
# ---------------------------------------------------------------------------
def init_linear(key, in_features, out_features):
    kw, kb = jax.random.split(key)
    bound = 1.0 / math.sqrt(in_features)
    # weight stored pre-transposed: [in_features, out_features]
    w = jax.random.uniform(
        kw, (in_features, out_features), jnp.float32, -bound, bound
    )
    b = jax.random.uniform(kb, (1, out_features), jnp.float32, -bound, bound)
    return w, b


if __name__ == "__main__":
    key = jax.random.PRNGKey(0)
    k_x0, k_x1, k_fc1, k_fc2 = jax.random.split(key, 4)

    # small shapes consistent with the module
    in1_features = 32
    in2_features = 16
    dim_pred = 8
    n1, n2 = 8, 8

    x0 = jax.random.normal(k_x0, (n1, in1_features), jnp.float32)
    x1 = jax.random.normal(k_x1, (n2, in2_features), jnp.float32)

    w1, b1 = init_linear(k_fc1, in1_features, dim_pred)
    w2, b2 = init_linear(k_fc2, in2_features, dim_pred)

    out = inner_product_decoder(x0, x1, w1, b1, w2, b2)
    out = jax.block_until_ready(out)

    # pure-JAX f32 reference (kernel uses bf16 operands -> loosened tolerance)
    ref = (x0 @ w1 + b1) @ (x1 @ w2 + b2).T
    assert out.shape == (n1, n2)
    assert jnp.allclose(out, ref, atol=5e-2, rtol=5e-2), (
        float(jnp.max(jnp.abs(out - ref)))
    )

    print("KERNEL_OK")
</pallas_src>

<mosaic_0001>
module attributes {stable_mosaic.version = 11 : i64} {
  func.func @_encode_kernel(%arg0: i32, %arg1: memref<128x128xbf16, #tpu.memory_space<vmem>>, %arg2: memref<128x128xbf16, #tpu.memory_space<vmem>>, %arg3: memref<1x128xf32, #tpu.memory_space<vmem>>, %arg4: memref<128x128xbf16, #tpu.memory_space<vmem>>) attributes {dimension_semantics = [#tpu.dimension_semantics<parallel>], iteration_bounds = array<i64: 1>, scalar_prefetch = 0 : i64, scratch_operands = 0 : i64, tpu.core_type = #tpu.core_type<tc>, window_params = [{transform_indices = @transform_0, window_bounds = array<i64: 128, 128>}, {pipeline_mode = #tpu.pipeline_mode<synchronous>, transform_indices = @transform_1, window_bounds = array<i64: 128, 128>}, {pipeline_mode = #tpu.pipeline_mode<synchronous>, transform_indices = @transform_2, window_bounds = array<i64: 1, 128>}, {transform_indices = @transform_3, window_bounds = array<i64: 128, 128>}]} {
    %c0 = arith.constant 0 : index
    %c0_0 = arith.constant 0 : index
    %0 = vector.load %arg1[%c0, %c0_0] : memref<128x128xbf16, #tpu.memory_space<vmem>>, vector<128x128xbf16>
    %c0_1 = arith.constant 0 : index
    %c0_2 = arith.constant 0 : index
    %1 = vector.load %arg2[%c0_1, %c0_2] : memref<128x128xbf16, #tpu.memory_space<vmem>>, vector<128x128xbf16>
    %cst = arith.constant dense<0.000000e+00> : vector<128x128xf32>
    %2 = tpu.matmul %0, %1, %cst {dimension_numbers = #tpu.dot_dimension_numbers<[1], [0], [0], [1], [0, 0, 1, 1], [], []>} : vector<128x128xbf16>, vector<128x128xbf16>, vector<128x128xf32> -> vector<128x128xf32>
    %c0_3 = arith.constant 0 : index
    %c0_4 = arith.constant 0 : index
    %3 = vector.load %arg3[%c0_3, %c0_4] : memref<1x128xf32, #tpu.memory_space<vmem>>, vector<1x128xf32>
    %4 = vector.broadcast %3 : vector<1x128xf32> to vector<128x128xf32>
    %5 = arith.addf %2, %4 : vector<128x128xf32>
    %6 = arith.truncf %5 : vector<128x128xf32> to vector<128x128xbf16>
    %c0_5 = arith.constant 0 : index
    %c0_6 = arith.constant 0 : index
    %7 = vector.load %arg4[%c0_5, %c0_6] : memref<128x128xbf16, #tpu.memory_space<vmem>>, vector<128x128xbf16>
    tpu.vector_store %arg4[%c0_5, %c0_6], %6 {strides = array<i32>} : memref<128x128xbf16, #tpu.memory_space<vmem>>, vector<128x128xbf16>,
    return
  }
  func.func @transform_0(%arg0: i32) -> (i32, i32) {
    %c0_i32 = arith.constant 0 : i32
    %c0_i32_0 = arith.constant 0 : i32
    return %arg0, %c0_i32 : i32, i32
  }
  func.func @transform_1(%arg0: i32) -> (i32, i32) {
    %c0_i32 = arith.constant 0 : i32
    %c0_i32_0 = arith.constant 0 : i32
    %c0_i32_1 = arith.constant 0 : i32
    return %c0_i32, %c0_i32_0 : i32, i32
  }
  func.func @transform_2(%arg0: i32) -> (i32, i32) {
    %c0_i32 = arith.constant 0 : i32
    %c0_i32_0 = arith.constant 0 : i32
    %c0_i32_1 = arith.constant 0 : i32
    return %c0_i32, %c0_i32_0 : i32, i32
  }
  func.func @transform_3(%arg0: i32) -> (i32, i32) {
    %c0_i32 = arith.constant 0 : i32
    %c0_i32_0 = arith.constant 0 : i32
    return %arg0, %c0_i32 : i32, i32
  }
}

module attributes {stable_mosaic.version = 11 : i64} {
  func.func @_decode_kernel_single(%arg0: i32, %arg1: i32, %arg2: i32, %arg3: memref<128x128xbf16, #tpu.memory_space<vmem>>, %arg4: memref<128x128xbf16, #tpu.memory_space<vmem>>, %arg5: memref<128x128xf32, #tpu.memory_space<vmem>>) attributes {dimension_semantics = [#tpu.dimension_semantics<parallel>, #tpu.dimension_semantics<parallel>, #tpu.dimension_semantics<arbitrary>], iteration_bounds = array<i64: 1, 1, 1>, scalar_prefetch = 0 : i64, scratch_operands = 0 : i64, tpu.core_type = #tpu.core_type<tc>, window_params = [{transform_indices = @transform_0, window_bounds = array<i64: 128, 128>}, {transform_indices = @transform_1, window_bounds = array<i64: 128, 128>}, {transform_indices = @transform_2, window_bounds = array<i64: 128, 128>}]} {
    %c0 = arith.constant 0 : index
    %c0_0 = arith.constant 0 : index
    %0 = vector.load %arg3[%c0, %c0_0] : memref<128x128xbf16, #tpu.memory_space<vmem>>, vector<128x128xbf16>
    %c0_1 = arith.constant 0 : index
    %c0_2 = arith.constant 0 : index
    %1 = vector.load %arg4[%c0_1, %c0_2] : memref<128x128xbf16, #tpu.memory_space<vmem>>, vector<128x128xbf16>
    %cst = arith.constant dense<0.000000e+00> : vector<128x128xf32>
    %2 = tpu.matmul %0, %1, %cst {dimension_numbers = #tpu.dot_dimension_numbers<[1], [1], [0], [0], [0, 0, 1, 0], [], []>} : vector<128x128xbf16>, vector<128x128xbf16>, vector<128x128xf32> -> vector<128x128xf32>
    %c0_3 = arith.constant 0 : index
    %c0_4 = arith.constant 0 : index
    %3 = vector.load %arg5[%c0_3, %c0_4] : memref<128x128xf32, #tpu.memory_space<vmem>>, vector<128x128xf32>
    tpu.vector_store %arg5[%c0_3, %c0_4], %2 {strides = array<i32>} : memref<128x128xf32, #tpu.memory_space<vmem>>, vector<128x128xf32>,
    return
  }
  func.func @transform_0(%arg0: i32, %arg1: i32, %arg2: i32) -> (i32, i32) {
    %c0_i32 = arith.constant 0 : i32
    return %arg0, %arg2 : i32, i32
  }
  func.func @transform_1(%arg0: i32, %arg1: i32, %arg2: i32) -> (i32, i32) {
    %c0_i32 = arith.constant 0 : i32
    return %arg1, %arg2 : i32, i32
  }
  func.func @transform_2(%arg0: i32, %arg1: i32, %arg2: i32) -> (i32, i32) {
    %c0_i32 = arith.constant 0 : i32
    return %arg0, %arg1 : i32, i32
  }
}

</mosaic_0001>

<llo_original>
// kernel: inner_product_decoder.3
$region0: #{inner_product_decoder.3}
  #allocation0 [shape = 'u32[]', space=smem, size = 0x4, offset = 0x4, fixed_abs, tag = 'smem constant byte address 0x4 - core index']
  #allocation1 [shape = 'u32[144,128]{1,0:T(1,128)}', space=vmem, size = 0x12000, scoped, tag = 'internal scratch']
  %s0 = inlined_call_operand.vmem [shape: bf16[128,128], index: 0, kind: input, shape index: {}]
  %s1 = inlined_call_operand.vmem [shape: bf16[128,128], index: 1, kind: input, shape index: {}]
  %s2 = inlined_call_operand.vmem [shape: f32[1,128], index: 2, kind: input, shape index: {}]
  %s3 = inlined_call_operand.vmem [shape: bf16[128,128], index: 3, kind: output, shape index: {}]
  %s4 = sld [smem:[#allocation0]]
  $region22: #{inner_product_decoder.3} parent=0
    _
  %s6 = ssub.s32 1, %s4
  %s7 = scalar_select 0, %s6, %s4
  // Predicated region
  $region2: #{inner_product_decoder.3} parent=0 // pred_check
    _
  $region3: #{inner_product_decoder.3} parent=0 // pred_check_branch
    %9 = sbr.rel (0) target = $region5
  $region4: #{inner_product_decoder.3} parent=0 // pred_region
    _
  $region5: #{inner_product_decoder.3} parent=0 // pred_fallthru
    _
  // Predicated region
  $region6: #{inner_product_decoder.3} parent=0 // pred_check
    _
  $region7: #{inner_product_decoder.3} parent=0 // pred_check_branch
    %11 = sbr.rel (0) target = $region9
  $region8: #{inner_product_decoder.3} parent=0 // pred_region
    _
  $region9: #{inner_product_decoder.3} parent=0 // pred_fallthru
    _
  // Predicated region
  $region10: #{inner_product_decoder.3} parent=0 // pred_check
    _
  $region11: #{inner_product_decoder.3} parent=0 // pred_check_branch
    %13 = sbr.rel (0) target = $region13
  $region12: #{inner_product_decoder.3} parent=0 // pred_region
    _
  $region13: #{inner_product_decoder.3} parent=0 // pred_fallthru
    _
  %v15 = vld [vmem:[%s0] sm:$0xf]
  %v16 = vld [vmem:[%s0 + $0x4] sm:$0xf]
  %v17 = vld [vmem:[%s0 + $0x8] sm:$0xf]
  %v18 = vld [vmem:[%s0 + $0xc] sm:$0xf]
  %v19 = vld [vmem:[%s0 + $0x10] sm:$0xf]
  %v20 = vld [vmem:[%s0 + $0x14] sm:$0xf]
  %v21 = vld [vmem:[%s0 + $0x18] sm:$0xf]
  %v22 = vld [vmem:[%s0 + $0x1c] sm:$0xf]
  %v23 = vld [vmem:[%s0 + $0x20] sm:$0xf]
  %v24 = vld [vmem:[%s0 + $0x24] sm:$0xf]
  %v25 = vld [vmem:[%s0 + $0x28] sm:$0xf]
  %v26 = vld [vmem:[%s0 + $0x2c] sm:$0xf]
  %v27 = vld [vmem:[%s0 + $0x30] sm:$0xf]
  %v28 = vld [vmem:[%s0 + $0x34] sm:$0xf]
  %v29 = vld [vmem:[%s0 + $0x38] sm:$0xf]
  %v30 = vld [vmem:[%s0 + $0x3c] sm:$0xf]
  %v31 = vld [vmem:[%s1] sm:$0xf]
  %v32 = vld [vmem:[%s1 + $0x4] sm:$0xf]
  %v33 = vld [vmem:[%s1 + $0x8] sm:$0xf]
  %v34 = vld [vmem:[%s1 + $0xc] sm:$0xf]
  %v35 = vld [vmem:[%s1 + $0x10] sm:$0xf]
  %v36 = vld [vmem:[%s1 + $0x14] sm:$0xf]
  %v37 = vld [vmem:[%s1 + $0x18] sm:$0xf]
  %v38 = vld [vmem:[%s1 + $0x1c] sm:$0xf]
  %v39 = vld [vmem:[%s1 + $0x20] sm:$0xf]
  %v40 = vld [vmem:[%s1 + $0x24] sm:$0xf]
  %v41 = vld [vmem:[%s1 + $0x28] sm:$0xf]
  %v42 = vld [vmem:[%s1 + $0x2c] sm:$0xf]
  %v43 = vld [vmem:[%s1 + $0x30] sm:$0xf]
  %v44 = vld [vmem:[%s1 + $0x34] sm:$0xf]
  %v45 = vld [vmem:[%s1 + $0x38] sm:$0xf]
  %v46 = vld [vmem:[%s1 + $0x3c] sm:$0xf]
  %v47 = vld [vmem:[%s2] sm:$0x1]
  %v49 = vlaneseq
  %v50 = vshrl.u32 %v49, 7
  %v51 = vsub.s32 0, %v50
  %v52 = vrot.slane %v47, %v51
  %v70 = vunpack.c.l.b16 %v15
  %v71 = vunpack.c.l.b16 %v16
  %v72 = vunpack.c.l.b16 %v17
  %v73 = vunpack.c.l.b16 %v18
  %v74 = vunpack.c.l.b16 %v19
  %v75 = vunpack.c.l.b16 %v20
  %v76 = vunpack.c.l.b16 %v21
  %v77 = vunpack.c.l.b16 %v22
  %v78 = vunpack.c.l.b16 %v23
  %v79 = vunpack.c.l.b16 %v24
  %v80 = vunpack.c.l.b16 %v25
  %v81 = vunpack.c.l.b16 %v26
  %v82 = vunpack.c.l.b16 %v27
  %v83 = vunpack.c.l.b16 %v28
  %v84 = vunpack.c.l.b16 %v29
  %v85 = vunpack.c.l.b16 %v30
  %v86 = vpack.c.b16 %v71, %v70
  %v87 = vpack.c.b16 %v73, %v72
  %v88 = vpack.c.b16 %v75, %v74
  %v89 = vpack.c.b16 %v77, %v76
  %v90 = vpack.c.b16 %v79, %v78
  %v91 = vpack.c.b16 %v81, %v80
  %v92 = vpack.c.b16 %v83, %v82
  %v93 = vpack.c.b16 %v85, %v84
  %v118 = vunpack.c.l.b16 %v31
  %v119 = vunpack.c.l.b16 %v32
  %v120 = vunpack.c.l.b16 %v33
  %v121 = vunpack.c.l.b16 %v34
  %v122 = vunpack.c.l.b16 %v35
  %v123 = vunpack.c.l.b16 %v36
  %v124 = vunpack.c.l.b16 %v37
  %v125 = vunpack.c.l.b16 %v38
  %v126 = vunpack.c.l.b16 %v39
  %v127 = vunpack.c.l.b16 %v40
  %v128 = vunpack.c.l.b16 %v41
  %v129 = vunpack.c.l.b16 %v42
  %v130 = vunpack.c.l.b16 %v43
  %v131 = vunpack.c.l.b16 %v44
  %v132 = vunpack.c.l.b16 %v45
  %v133 = vunpack.c.l.b16 %v46
  %v134 = vpack.c.b16 %v119, %v118
  %v135 = vpack.c.b16 %v121, %v120
  %v136 = vpack.c.b16 %v123, %v122
  %v137 = vpack.c.b16 %v125, %v124
  %v138 = vpack.c.b16 %v127, %v126
  %v139 = vpack.c.b16 %v129, %v128
  %v140 = vpack.c.b16 %v131, %v130
  %v141 = vpack.c.b16 %v133, %v132
  %150 = vmatprep.subr.bf16.mxu0 0
  %151 = vmatpush1.bf16.msra.mxu0 %v141
  %152 = vmatprep.subr.bf16.mxu0 0
  %153 = vmatpush1.bf16.msra.mxu0 %v140
  %154 = vmatprep.subr.bf16.mxu0 0
  %155 = vmatpush1.bf16.msra.mxu0 %v139
  %156 = vmatprep.subr.bf16.mxu0 0
  %157 = vmatpush1.bf16.msra.mxu0 %v138
  %158 = vmatprep.subr.bf16.mxu0 0
  %159 = vmatpush1.bf16.msra.mxu0 %v137
  %160 = vmatprep.subr.bf16.mxu0 0
  %161 = vmatpush1.bf16.msra.mxu0 %v136
  %162 = vmatprep.subr.bf16.mxu0 0
  %163 = vmatpush1.bf16.msra.mxu0 %v135
  %164 = vmatprep.subr.bf16.mxu0 0
  %165 = vmatpush1.bf16.msra.mxu0 %v134
  %166 = vmatprep.subr.bf16.mxu0 0
  %167 = vmatpush2.bf16.msra.mxu0 0
  %168 = vmatprep.subr.bf16.mxu0 0
  %169 = vmatpush2.bf16.msra.mxu0 0
  %170 = vmatprep.subr.bf16.mxu0 0
  %171 = vmatpush2.bf16.msra.mxu0 0
  %172 = vmatprep.subr.bf16.mxu0 0
  %173 = vmatpush2.bf16.msra.mxu0 0
  %174 = vmatprep.subr.bf16.mxu0 0
  %175 = vmatpush2.bf16.msra.mxu0 0
  %176 = vmatprep.subr.bf16.mxu0 0
  %177 = vmatpush2.bf16.msra.mxu0 0
  %178 = vmatprep.subr.bf16.mxu0 0
  %179 = vmatpush2.bf16.msra.mxu0 0
  %180 = vmatprep.subr.bf16.mxu0 0
  %181 = vmatpush2.bf16.msra.mxu0 0
  %182 = vmatprep.mubr.bf16.mxu0 0
  %183 = vmatmul.mubr.bf16.gmra.mxu0 %v86
  %v184 = vpop.f32.mrf.mxu0
  %v185 = vadd.f32 %v52, %v184
  %v186 = vpop.f32.mrf.mxu0
  %v187 = vpop.f32.mrf.mxu0
  %v188 = vadd.f32 %v52, %v187
  %v189 = vpop.f32.mrf.mxu0
  %190 = vmatprep.mubr.bf16.mxu0 0
  %191 = vmatmul.mubr.bf16.gmra.mxu0 %v87
  %v192 = vpop.f32.mrf.mxu0
  %v193 = vadd.f32 %v52, %v192
  %v194 = vpop.f32.mrf.mxu0
  %v195 = vpop.f32.mrf.mxu0
  %v196 = vadd.f32 %v52, %v195
  %v197 = vpop.f32.mrf.mxu0
  %198 = vmatprep.mubr.bf16.mxu0 0
  %199 = vmatmul.mubr.bf16.gmra.mxu0 %v88
  %v200 = vpop.f32.mrf.mxu0
  %v201 = vadd.f32 %v52, %v200
  %v202 = vpop.f32.mrf.mxu0
  %v203 = vpop.f32.mrf.mxu0
  %v204 = vadd.f32 %v52, %v203
  %v205 = vpop.f32.mrf.mxu0
  %206 = vmatprep.mubr.bf16.mxu0 0
  %207 = vmatmul.mubr.bf16.gmra.mxu0 %v89
  %v208 = vpop.f32.mrf.mxu0
  %v209 = vadd.f32 %v52, %v208
  %v210 = vpop.f32.mrf.mxu0
  %v211 = vpop.f32.mrf.mxu0
  %v212 = vadd.f32 %v52, %v211
  %v213 = vpop.f32.mrf.mxu0
  %214 = vmatprep.mubr.bf16.mxu0 0
  %215 = vmatmul.mubr.bf16.gmra.mxu0 %v90
  %v216 = vpop.f32.mrf.mxu0
  %v217 = vadd.f32 %v52, %v216
  %v218 = vpop.f32.mrf.mxu0
  %v219 = vpop.f32.mrf.mxu0
  %v220 = vadd.f32 %v52, %v219
  %v221 = vpop.f32.mrf.mxu0
  %222 = vmatprep.mubr.bf16.mxu0 0
  %223 = vmatmul.mubr.bf16.gmra.mxu0 %v91
  %v224 = vpop.f32.mrf.mxu0
  %v225 = vadd.f32 %v52, %v224
  %v226 = vpop.f32.mrf.mxu0
  %v227 = vpop.f32.mrf.mxu0
  %v228 = vadd.f32 %v52, %v227
  %v229 = vpop.f32.mrf.mxu0
  %230 = vmatprep.mubr.bf16.mxu0 0
  %231 = vmatmul.mubr.bf16.gmra.mxu0 %v92
  %v232 = vpop.f32.mrf.mxu0
  %v233 = vadd.f32 %v52, %v232
  %v234 = vpop.f32.mrf.mxu0
  %v235 = vpop.f32.mrf.mxu0
  %v236 = vadd.f32 %v52, %v235
  %v237 = vpop.f32.mrf.mxu0
  %238 = vmatprep.mubr.bf16.mxu0 0
  %239 = vmatmul.mubr.bf16.gmra.mxu0 %v93
  %v240 = vpop.f32.mrf.mxu0
  %v241 = vadd.f32 %v52, %v240
  %v242 = vpop.f32.mrf.mxu0
  %v243 = vpop.f32.mrf.mxu0
  %v244 = vadd.f32 %v52, %v243
  %v245 = vpop.f32.mrf.mxu0
  %246 = vdwg.mxu0
  %v247 = vpack.c.bf16 %v188, %v185
  %v248 = vpack.c.bf16 %v196, %v193
  %v249 = vpack.c.bf16 %v204, %v201
  %v250 = vpack.c.bf16 %v212, %v209
  %v251 = vpack.c.bf16 %v220, %v217
  %v252 = vpack.c.bf16 %v228, %v225
  %v253 = vpack.c.bf16 %v236, %v233
  %v254 = vpack.c.bf16 %v244, %v241
  %v263 = vunpack.c.l.b16 %v247
  %v264 = vunpack.c.h.b16 %v247
  %v265 = vunpack.c.l.b16 %v248
  %v266 = vunpack.c.h.b16 %v248
  %v267 = vunpack.c.l.b16 %v249
  %v268 = vunpack.c.h.b16 %v249
  %v269 = vunpack.c.l.b16 %v250
  %v270 = vunpack.c.h.b16 %v250
  %v271 = vunpack.c.l.b16 %v251
  %v272 = vunpack.c.h.b16 %v251
  %v273 = vunpack.c.l.b16 %v252
  %v274 = vunpack.c.h.b16 %v252
  %v275 = vunpack.c.l.b16 %v253
  %v276 = vunpack.c.h.b16 %v253
  %v277 = vunpack.c.l.b16 %v254
  %v278 = vunpack.c.h.b16 %v254
  %v279 = vpack.c.b16 %v263, %v263
  %v280 = vpack.c.b16 %v264, %v264
  %v281 = vpack.c.b16 %v265, %v265
  %v282 = vpack.c.b16 %v266, %v266
  %v283 = vpack.c.b16 %v267, %v267
  %v284 = vpack.c.b16 %v268, %v268
  %v285 = vpack.c.b16 %v269, %v269
  %v286 = vpack.c.b16 %v270, %v270
  %v287 = vpack.c.b16 %v271, %v271
  %v288 = vpack.c.b16 %v272, %v272
  %v289 = vpack.c.b16 %v273, %v273
  %v290 = vpack.c.b16 %v274, %v274
  %v291 = vpack.c.b16 %v275, %v275
  %v292 = vpack.c.b16 %v276, %v276
  %v293 = vpack.c.b16 %v277, %v277
  %v294 = vpack.c.b16 %v278, %v278
  %311 = vst [vmem:[%s3] sm:$0xf] %v279
  %312 = vst [vmem:[%s3 + $0x4] sm:$0xf] %v280
  %313 = vst [vmem:[%s3 + $0x8] sm:$0xf] %v281
  %314 = vst [vmem:[%s3 + $0xc] sm:$0xf] %v282
  %315 = vst [vmem:[%s3 + $0x10] sm:$0xf] %v283
  %316 = vst [vmem:[%s3 + $0x14] sm:$0xf] %v284
  %317 = vst [vmem:[%s3 + $0x18] sm:$0xf] %v285
  %318 = vst [vmem:[%s3 + $0x1c] sm:$0xf] %v286
  %319 = vst [vmem:[%s3 + $0x20] sm:$0xf] %v287
  %320 = vst [vmem:[%s3 + $0x24] sm:$0xf] %v288
  %321 = vst [vmem:[%s3 + $0x28] sm:$0xf] %v289
  %322 = vst [vmem:[%s3 + $0x2c] sm:$0xf] %v290
  %323 = vst [vmem:[%s3 + $0x30] sm:$0xf] %v291
  %324 = vst [vmem:[%s3 + $0x34] sm:$0xf] %v292
  %325 = vst [vmem:[%s3 + $0x38] sm:$0xf] %v293
  %326 = vst [vmem:[%s3 + $0x3c] sm:$0xf] %v294
  // Predicated region
  $region14: #{inner_product_decoder.3} parent=0 // pred_check
    _
  $region15: #{inner_product_decoder.3} parent=0 // pred_check_branch
    %328 = sbr.rel (0) target = $region17
  $region16: #{inner_product_decoder.3} parent=0 // pred_region
    _
  $region17: #{inner_product_decoder.3} parent=0 // pred_fallthru
    _
  // Predicated region
  $region18: #{inner_product_decoder.3} parent=0 // pred_check
    _
  $region19: #{inner_product_decoder.3} parent=0 // pred_check_branch
    %330 = sbr.rel (0) target = $region21
  $region20: #{inner_product_decoder.3} parent=0 // pred_region
    _
  $region21: #{inner_product_decoder.3} parent=0 // pred_fallthru
    _

// kernel: inner_product_decoder.5
$region0: #{inner_product_decoder.5}
  #allocation0 [shape = 'u32[]', space=smem, size = 0x4, offset = 0x4, fixed_abs, tag = 'smem constant byte address 0x4 - core index']
  #allocation1 [shape = 'u32[144,128]{1,0:T(1,128)}', space=vmem, size = 0x12000, scoped, tag = 'internal scratch']
  %s0 = inlined_call_operand.vmem [shape: bf16[128,128], index: 0, kind: input, shape index: {}]
  %s1 = inlined_call_operand.vmem [shape: bf16[128,128], index: 1, kind: input, shape index: {}]
  %s2 = inlined_call_operand.hbm [shape: f32[8,8], index: 2, kind: output, shape index: {}]
  %s3 = sld [smem:[#allocation0]]
  $region18: #{inner_product_decoder.5} parent=0
    _
  %s5 = ssub.s32 1, %s3
  %s6 = scalar_select 0, %s5, %s3
  $region1: #{inner_product_decoder.5} parent=0
    #allocation2 [shape = 'u8[65536]{0}', space=vmem, size = 0x10000, scoped, tag = 'output window, operand 0, single buffered']
    #allocation3 [shape = 's32[1]{0}', space=sflag, size = 0x4, scoped, tag = 'scoped memory for inner_product_decoder.5']
    %7 = vsyncpa [#allocation3], 0
    // Predicated region
    $region2: #{inner_product_decoder.5} parent=1 // pred_check
      _
    $region3: #{inner_product_decoder.5} parent=1 // pred_check_branch
      %9 = sbr.rel (0) target = $region5
    $region4: #{inner_product_decoder.5} parent=1 // pred_region
      _
    $region5: #{inner_product_decoder.5} parent=1 // pred_fallthru
      _
    // Predicated region
    $region6: #{inner_product_decoder.5} parent=1 // pred_check
      _
    $region7: #{inner_product_decoder.5} parent=1 // pred_check_branch
      %11 = sbr.rel (0) target = $region9
    $region8: #{inner_product_decoder.5} parent=1 // pred_region
      _
    $region9: #{inner_product_decoder.5} parent=1 // pred_fallthru
      _
    %v13 = vld [vmem:[%s0] sm:$0xf]
    %v14 = vld [vmem:[%s0 + $0x4] sm:$0xf]
    %v15 = vld [vmem:[%s0 + $0x8] sm:$0xf]
    %v16 = vld [vmem:[%s0 + $0xc] sm:$0xf]
    %v17 = vld [vmem:[%s0 + $0x10] sm:$0xf]
    %v18 = vld [vmem:[%s0 + $0x14] sm:$0xf]
    %v19 = vld [vmem:[%s0 + $0x18] sm:$0xf]
    %v20 = vld [vmem:[%s0 + $0x1c] sm:$0xf]
    %v21 = vld [vmem:[%s0 + $0x20] sm:$0xf]
    %v22 = vld [vmem:[%s0 + $0x24] sm:$0xf]
    %v23 = vld [vmem:[%s0 + $0x28] sm:$0xf]
    %v24 = vld [vmem:[%s0 + $0x2c] sm:$0xf]
    %v25 = vld [vmem:[%s0 + $0x30] sm:$0xf]
    %v26 = vld [vmem:[%s0 + $0x34] sm:$0xf]
    %v27 = vld [vmem:[%s0 + $0x38] sm:$0xf]
    %v28 = vld [vmem:[%s0 + $0x3c] sm:$0xf]
    %v29 = vld [vmem:[%s1] sm:$0xf]
    %v30 = vld [vmem:[%s1 + $0x4] sm:$0xf]
    %v31 = vld [vmem:[%s1 + $0x8] sm:$0xf]
    %v32 = vld [vmem:[%s1 + $0xc] sm:$0xf]
    %v33 = vld [vmem:[%s1 + $0x10] sm:$0xf]
    %v34 = vld [vmem:[%s1 + $0x14] sm:$0xf]
    %v35 = vld [vmem:[%s1 + $0x18] sm:$0xf]
    %v36 = vld [vmem:[%s1 + $0x1c] sm:$0xf]
    %v37 = vld [vmem:[%s1 + $0x20] sm:$0xf]
    %v38 = vld [vmem:[%s1 + $0x24] sm:$0xf]
    %v39 = vld [vmem:[%s1 + $0x28] sm:$0xf]
    %v40 = vld [vmem:[%s1 + $0x2c] sm:$0xf]
    %v41 = vld [vmem:[%s1 + $0x30] sm:$0xf]
    %v42 = vld [vmem:[%s1 + $0x34] sm:$0xf]
    %v43 = vld [vmem:[%s1 + $0x38] sm:$0xf]
    %v44 = vld [vmem:[%s1 + $0x3c] sm:$0xf]
    %v61 = vunpack.c.l.b16 %v13
    %v62 = vunpack.c.l.b16 %v14
    %v63 = vunpack.c.l.b16 %v15
    %v64 = vunpack.c.l.b16 %v16
    %v65 = vunpack.c.l.b16 %v17
    %v66 = vunpack.c.l.b16 %v18
    %v67 = vunpack.c.l.b16 %v19
    %v68 = vunpack.c.l.b16 %v20
    %v69 = vunpack.c.l.b16 %v21
    %v70 = vunpack.c.l.b16 %v22
    %v71 = vunpack.c.l.b16 %v23
    %v72 = vunpack.c.l.b16 %v24
    %v73 = vunpack.c.l.b16 %v25
    %v74 = vunpack.c.l.b16 %v26
    %v75 = vunpack.c.l.b16 %v27
    %v76 = vunpack.c.l.b16 %v28
    %v77 = vpack.c.b16 %v62, %v61
    %v78 = vpack.c.b16 %v64, %v63
    %v79 = vpack.c.b16 %v66, %v65
    %v80 = vpack.c.b16 %v68, %v67
    %v81 = vpack.c.b16 %v70, %v69
    %v82 = vpack.c.b16 %v72, %v71
    %v83 = vpack.c.b16 %v74, %v73
    %v84 = vpack.c.b16 %v76, %v75
    %v109 = vunpack.c.l.b16 %v29
    %v110 = vunpack.c.l.b16 %v30
    %v111 = vunpack.c.l.b16 %v31
    %v112 = vunpack.c.l.b16 %v32
    %v113 = vunpack.c.l.b16 %v33
    %v114 = vunpack.c.l.b16 %v34
    %v115 = vunpack.c.l.b16 %v35
    %v116 = vunpack.c.l.b16 %v36
    %v117 = vunpack.c.l.b16 %v37
    %v118 = vunpack.c.l.b16 %v38
    %v119 = vunpack.c.l.b16 %v39
    %v120 = vunpack.c.l.b16 %v40
    %v121 = vunpack.c.l.b16 %v41
    %v122 = vunpack.c.l.b16 %v42
    %v123 = vunpack.c.l.b16 %v43
    %v124 = vunpack.c.l.b16 %v44
    %v125 = vpack.c.b16 %v110, %v109
    %v126 = vpack.c.b16 %v112, %v111
    %v127 = vpack.c.b16 %v114, %v113
    %v128 = vpack.c.b16 %v116, %v115
    %v129 = vpack.c.b16 %v118, %v117
    %v130 = vpack.c.b16 %v120, %v119
    %v131 = vpack.c.b16 %v122, %v121
    %v132 = vpack.c.b16 %v124, %v123
    %141 = vmatprep.subr.bf16.mxu0 0
    %142 = vmatpush1.bf16.xpose.msra.mxu0 %v132
    %143 = vmatprep.subr.bf16.mxu0 0
    %144 = vmatpush1.bf16.xpose.msra.mxu0 %v131
    %145 = vmatprep.subr.bf16.mxu0 0
    %146 = vmatpush1.bf16.xpose.msra.mxu0 %v130
    %147 = vmatprep.subr.bf16.mxu0 0
    %148 = vmatpush1.bf16.xpose.msra.mxu0 %v129
    %149 = vmatprep.subr.bf16.mxu0 0
    %150 = vmatpush1.bf16.xpose.msra.mxu0 %v128
    %151 = vmatprep.subr.bf16.mxu0 0
    %152 = vmatpush1.bf16.xpose.msra.mxu0 %v127
    %153 = vmatprep.subr.bf16.mxu0 0
    %154 = vmatpush1.bf16.xpose.msra.mxu0 %v126
    %155 = vmatprep.subr.bf16.mxu0 0
    %156 = vmatpush1.bf16.xpose.msra.mxu0 %v125
    %157 = vmatprep.subr.bf16.mxu0 0
    %158 = vmatpush2.bf16.xpose.msra.mxu0 0
    %159 = vmatprep.subr.bf16.mxu0 0
    %160 = vmatpush2.bf16.xpose.msra.mxu0 0
    %161 = vmatprep.subr.bf16.mxu0 0
    %162 = vmatpush2.bf16.xpose.msra.mxu0 0
    %163 = vmatprep.subr.bf16.mxu0 0
    %164 = vmatpush2.bf16.xpose.msra.mxu0 0
    %165 = vmatprep.subr.bf16.mxu0 0
    %166 = vmatpush2.bf16.xpose.msra.mxu0 0
    %167 = vmatprep.subr.bf16.mxu0 0
    %168 = vmatpush2.bf16.xpose.msra.mxu0 0
    %169 = vmatprep.subr.bf16.mxu0 0
    %170 = vmatpush2.bf16.xpose.msra.mxu0 0
    %171 = vmatprep.subr.bf16.mxu0 0
    %172 = vmatpush2.bf16.xpose.msra.mxu0 0
    %173 = vmatprep.mubr.bf16.mxu0 0
    %174 = vmatmul.mubr.bf16.gmra.mxu0 %v77
    %v175 = vpop.f32.mrf.mxu0
    %v176 = vadd.f32 0.0, %v175
    %v177 = vpop.f32.mrf.mxu0
    %v178 = vpop.f32.mrf.mxu0
    %v179 = vadd.f32 0.0, %v178
    %v180 = vpop.f32.mrf.mxu0
    %181 = vmatprep.mubr.bf16.mxu0 0
    %182 = vmatmul.mubr.bf16.gmra.mxu0 %v78
    %v183 = vpop.f32.mrf.mxu0
    %v184 = vadd.f32 0.0, %v183
    %v185 = vpop.f32.mrf.mxu0
    %v186 = vpop.f32.mrf.mxu0
    %v187 = vadd.f32 0.0, %v186
    %v188 = vpop.f32.mrf.mxu0
    %189 = vmatprep.mubr.bf16.mxu0 0
    %190 = vmatmul.mubr.bf16.gmra.mxu0 %v79
    %v191 = vpop.f32.mrf.mxu0
    %v192 = vadd.f32 0.0, %v191
    %v193 = vpop.f32.mrf.mxu0
    %v194 = vpop.f32.mrf.mxu0
    %v195 = vadd.f32 0.0, %v194
    %v196 = vpop.f32.mrf.mxu0
    %197 = vmatprep.mubr.bf16.mxu0 0
    %198 = vmatmul.mubr.bf16.gmra.mxu0 %v80
    %v199 = vpop.f32.mrf.mxu0
    %v200 = vadd.f32 0.0, %v199
    %v201 = vpop.f32.mrf.mxu0
    %v202 = vpop.f32.mrf.mxu0
    %v203 = vadd.f32 0.0, %v202
    %v204 = vpop.f32.mrf.mxu0
    %205 = vmatprep.mubr.bf16.mxu0 0
    %206 = vmatmul.mubr.bf16.gmra.mxu0 %v81
    %v207 = vpop.f32.mrf.mxu0
    %v208 = vadd.f32 0.0, %v207
    %v209 = vpop.f32.mrf.mxu0
    %v210 = vpop.f32.mrf.mxu0
    %v211 = vadd.f32 0.0, %v210
    %v212 = vpop.f32.mrf.mxu0
    %213 = vmatprep.mubr.bf16.mxu0 0
    %214 = vmatmul.mubr.bf16.gmra.mxu0 %v82
    %v215 = vpop.f32.mrf.mxu0
    %v216 = vadd.f32 0.0, %v215
    %v217 = vpop.f32.mrf.mxu0
    %v218 = vpop.f32.mrf.mxu0
    %v219 = vadd.f32 0.0, %v218
    %v220 = vpop.f32.mrf.mxu0
    %221 = vmatprep.mubr.bf16.mxu0 0
    %222 = vmatmul.mubr.bf16.gmra.mxu0 %v83
    %v223 = vpop.f32.mrf.mxu0
    %v224 = vadd.f32 0.0, %v223
    %v225 = vpop.f32.mrf.mxu0
    %v226 = vpop.f32.mrf.mxu0
    %v227 = vadd.f32 0.0, %v226
    %v228 = vpop.f32.mrf.mxu0
    %229 = vmatprep.mubr.bf16.mxu0 0
    %230 = vmatmul.mubr.bf16.gmra.mxu0 %v84
    %v231 = vpop.f32.mrf.mxu0
    %v232 = vadd.f32 0.0, %v231
    %v233 = vpop.f32.mrf.mxu0
    %v234 = vpop.f32.mrf.mxu0
    %v235 = vadd.f32 0.0, %v234
    %v236 = vpop.f32.mrf.mxu0
    %237 = vdwg.mxu0
    %238 = vst [vmem:[#allocation2] sm:$0xff] %v176
    %239 = vst [vmem:[#allocation2 + $0x8] sm:$0xff] %v179
    %240 = vst [vmem:[#allocation2 + $0x10] sm:$0xff] %v184
    %241 = vst [vmem:[#allocation2 + $0x18] sm:$0xff] %v187
    %242 = vst [vmem:[#allocation2 + $0x20] sm:$0xff] %v192
    %243 = vst [vmem:[#allocation2 + $0x28] sm:$0xff] %v195
    %244 = vst [vmem:[#allocation2 + $0x30] sm:$0xff] %v200
    %245 = vst [vmem:[#allocation2 + $0x38] sm:$0xff] %v203
    %246 = vst [vmem:[#allocation2 + $0x40] sm:$0xff] %v208
    %247 = vst [vmem:[#allocation2 + $0x48] sm:$0xff] %v211
    %248 = vst [vmem:[#allocation2 + $0x50] sm:$0xff] %v216
    %249 = vst [vmem:[#allocation2 + $0x58] sm:$0xff] %v219
    %250 = vst [vmem:[#allocation2 + $0x60] sm:$0xff] %v224
    %251 = vst [vmem:[#allocation2 + $0x68] sm:$0xff] %v227
    %252 = vst [vmem:[#allocation2 + $0x70] sm:$0xff] %v232
    %253 = vst [vmem:[#allocation2 + $0x78] sm:$0xff] %v235
    // Predicated region
    $region10: #{inner_product_decoder.5} parent=1 // pred_check
      _
    $region11: #{inner_product_decoder.5} parent=1 // pred_check_branch
      %255 = sbr.rel (0) target = $region13
    $region12: #{inner_product_decoder.5} parent=1 // pred_region
      %s257 = ssub.s32 2048, 128
      %258 = vsyncadd [#allocation3], %s257
      %s259 = sshll.u32 [#allocation2], 4
      %s260 = int_to_ptr.vmem [resolvable:$true] %s259
      %265 = dma.vmem_to_hbm [thread:$0]  %s260, 128, %s2, [#allocation3], 128, 128, 8
    $region13: #{inner_product_decoder.5} parent=1 // pred_fallthru
      _
    // Predicated region
    $region14: #{inner_product_decoder.5} parent=1 // pred_check
      _
    $region15: #{inner_product_decoder.5} parent=1 // pred_check_branch
      %267 = sbr.rel (0) target = $region17
    $region16: #{inner_product_decoder.5} parent=1 // pred_region
      %268 = dma.done [#allocation3], 2048
    $region17: #{inner_product_decoder.5} parent=1 // pred_fallthru
      _
    %269 = vsyncpa [#allocation3], 1

</llo_original>
